<compile_context>
chip_gen: v6e
topology: v6e:2x2x1
jax: 0.10.0
libtpu: 0.0.40
codegen_flags: <defaults>
</compile_context>

<pallas_src>
import functools

import jax
import jax.numpy as jnp
from jax.experimental import pallas as pl
from jax.experimental.pallas import tpu as pltpu

# Safe scoped-VMEM budget across v5e / v6e / v7x (v7x physical VMEM is 64 MiB).
VMEM_LIMIT = 48 * 1024 * 1024
# A weight this size or smaller is kept fully VMEM-resident for the GEMM.
RESIDENT_WEIGHT_BYTES = 24 * 1024 * 1024


def _pick_tile(dim, preferred, unit):
    """Largest multiple of `unit` that divides `dim` and is <= preferred.

    Scans all multiples of `unit` (not just powers of two), so e.g. widths of
    3*d_model tile cleanly.  Falls back to the full dimension (always legal
    for a BlockSpec) when no such multiple exists -- this is what makes the
    small demo shapes work while realistic shapes get proper tiling.
    """
    best = None
    t = unit
    while t <= min(preferred, dim):
        if dim % t == 0:
            best = t
        t += unit
    return best if best is not None else dim


# --------------------------- linear (+ReLU) kernels --------------------------

def _linear_resident_kernel(x_ref, w_ref, b_ref, o_ref, *, relu):
    """Whole weight resident in VMEM; one MXU pass per row tile."""
    acc = jnp.dot(x_ref[...], w_ref[...], preferred_element_type=jnp.float32)
    acc = acc + b_ref[...]
    if relu:
        acc = jnp.maximum(acc, 0.0)
    o_ref[...] = acc.astype(o_ref.dtype)


def _linear_tiled_kernel(x_ref, w_ref, b_ref, o_ref, acc_ref, *, relu):
    """K/N-tiled streaming fallback (only used for very large weights)."""
    @pl.when(pl.program_id(2) == 0)
    def _():
        acc_ref[...] = jnp.zeros_like(acc_ref)

    acc_ref[...] += jnp.dot(x_ref[...], w_ref[...],
                            preferred_element_type=jnp.float32)

    @pl.when(pl.program_id(2) == pl.num_programs(2) - 1)
    def _():
        out = acc_ref[...] + b_ref[...]
        if relu:
            out = jnp.maximum(out, 0.0)
        o_ref[...] = out.astype(o_ref.dtype)


def linear(x, w, b, *, relu=False, out_dtype=jnp.float32, tm=512):
    """x: (M, K) bf16, w: (K, N) bf16, b: (N,) f32 -> (M, N) out_dtype."""
    M, K = x.shape
    _, N = w.shape
    b2 = b.reshape(1, N).astype(jnp.float32)
    out_isz = jnp.dtype(out_dtype).itemsize
    w_bytes = K * N * w.dtype.itemsize

    if w_bytes <= RESIDENT_WEIGHT_BYTES:
        # Weight stays resident; stream only the activation over row tiles.
        per_row = 2 * (K * x.dtype.itemsize + N * out_isz)   # dbl-buffered x/out
        tm_pref = max(16, (VMEM_LIMIT - w_bytes - (2 << 20)) // max(per_row, 1))
        tm_r = _pick_tile(M, min(tm, tm_pref), 16)
        cost = pl.CostEstimate(
            flops=2 * M * N * K, transcendentals=0,
            bytes_accessed=M * K * x.dtype.itemsize + w_bytes + 4 * N
            + M * N * out_isz)
        return pl.pallas_call(
            functools.partial(_linear_resident_kernel, relu=relu),
            out_shape=jax.ShapeDtypeStruct((M, N), out_dtype),
            grid=(M // tm_r,),
            in_specs=[
                pl.BlockSpec((tm_r, K), lambda i: (i, 0)),
                pl.BlockSpec((K, N), lambda i: (0, 0)),     # constant -> resident
                pl.BlockSpec((1, N), lambda i: (0, 0)),
            ],
            out_specs=pl.BlockSpec((tm_r, N), lambda i: (i, 0)),
            compiler_params=pltpu.CompilerParams(
                dimension_semantics=("parallel",),
                vmem_limit_bytes=VMEM_LIMIT),
            cost_estimate=cost,
        )(x, w, b2)

    # Fallback: K/N-tiled streaming matmul with f32 accumulator scratch.
    tm_t = _pick_tile(M, 256, 16)
    tn = _pick_tile(N, 512, 128)
    tk = _pick_tile(K, 512, 128)
    cost = pl.CostEstimate(
        flops=2 * M * N * K, transcendentals=0,
        bytes_accessed=(N // tn) * M * K * x.dtype.itemsize
        + (M // tm_t) * w_bytes + M * N * out_isz)
    return pl.pallas_call(
        functools.partial(_linear_tiled_kernel, relu=relu),
        out_shape=jax.ShapeDtypeStruct((M, N), out_dtype),
        grid=(M // tm_t, N // tn, K // tk),
        in_specs=[
            pl.BlockSpec((tm_t, tk), lambda i, j, k: (i, k)),
            # Deeper weight pipelining hides the weight DMA on v5e's slower HBM.
            pl.BlockSpec((tk, tn), lambda i, j, k: (k, j),
                         pipeline_mode=pl.Buffered(3)),
            pl.BlockSpec((1, tn), lambda i, j, k: (0, j)),
        ],
        out_specs=pl.BlockSpec((tm_t, tn), lambda i, j, k: (i, j)),
        scratch_shapes=[pltpu.VMEM((tm_t, tn), jnp.float32)],
        compiler_params=pltpu.CompilerParams(
            dimension_semantics=("parallel", "parallel", "arbitrary"),
            vmem_limit_bytes=VMEM_LIMIT),
        cost_estimate=cost,
    )(x, w, b2)


# ----------- linear with fused residual-add + LayerNorm (dual out) -----------

def _ln_epilogue(y, g, beta, eps, n):
    """One-pass LayerNorm statistics (sum / sum-of-squares)."""
    s1 = jnp.sum(y, axis=-1, keepdims=True)
    s2 = jnp.sum(y * y, axis=-1, keepdims=True)
    mu = s1 * (1.0 / n)
    var = s2 * (1.0 / n) - mu * mu
    inv = jax.lax.rsqrt(jnp.maximum(var, 0.0) + eps)
    return (y - mu) * inv * g + beta


def _linear_add_ln_kernel(x_ref, w_ref, b_ref, r_ref, g_ref, beta_ref,
                          o32_ref, o16_ref, *, eps, n):
    y = jnp.dot(x_ref[...], w_ref[...], preferred_element_type=jnp.float32)
    y = y + b_ref[...] + r_ref[...]                     # bias + residual
    z = _ln_epilogue(y, g_ref[...], beta_ref[...], eps, n)
    o32_ref[...] = z
    o16_ref[...] = z.astype(jnp.bfloat16)               # fused cast for next GEMM


def _linear_add_ln_tiled_kernel(x_ref, w_ref, b_ref, r_ref, g_ref, beta_ref,
                                o32_ref, o16_ref, *, eps, n):
    # Accumulate directly into the resident f32 output block (no scratch).
    @pl.when(pl.program_id(1) == 0)
    def _():
        o32_ref[...] = jnp.zeros_like(o32_ref)

    o32_ref[...] += jnp.dot(x_ref[...], w_ref[...],
                            preferred_element_type=jnp.float32)

    @pl.when(pl.program_id(1) == pl.num_programs(1) - 1)
    def _():
        y = o32_ref[...] + b_ref[...] + r_ref[...]
        z = _ln_epilogue(y, g_ref[...], beta_ref[...], eps, n)
        o32_ref[...] = z
        o16_ref[...] = z.astype(jnp.bfloat16)


def linear_add_ln(x, w, b, residual, gamma, beta, *, eps=1e-5, tm=512):
    """LayerNorm(residual + x @ w + b); returns (f32 result, bf16 copy).

    x: (M, K) bf16, w: (K, N) bf16, residual: (M, N) f32.
    """
    M, K = x.shape
    _, N = w.shape
    w_bytes = K * N * w.dtype.itemsize
    args = (x, w, b.reshape(1, N).astype(jnp.float32), residual,
            gamma.reshape(1, N).astype(jnp.float32),
            beta.reshape(1, N).astype(jnp.float32))
    out_shape = (jax.ShapeDtypeStruct((M, N), jnp.float32),
                 jax.ShapeDtypeStruct((M, N), jnp.bfloat16))
    cost = pl.CostEstimate(
        flops=2 * M * N * K, transcendentals=0,
        bytes_accessed=M * K * x.dtype.itemsize + w_bytes + M * N * 4
        + M * N * (4 + 2))

    if w_bytes <= RESIDENT_WEIGHT_BYTES:
        # per-row VMEM (double-buffered): x bf16 + residual f32 + out f32 + out bf16
        per_row = 2 * (K * x.dtype.itemsize + N * 4 + N * 4 + N * 2)
        tm_pref = max(16, (VMEM_LIMIT - w_bytes - (2 << 20)) // max(per_row, 1))
        tm_r = _pick_tile(M, min(tm, tm_pref), 16)
        return pl.pallas_call(
            functools.partial(_linear_add_ln_kernel, eps=eps, n=float(N)),
            out_shape=out_shape,
            grid=(M // tm_r,),
            in_specs=[
                pl.BlockSpec((tm_r, K), lambda i: (i, 0)),
                pl.BlockSpec((K, N), lambda i: (0, 0)),    # resident weight
                pl.BlockSpec((1, N), lambda i: (0, 0)),
                pl.BlockSpec((tm_r, N), lambda i: (i, 0)),
                pl.BlockSpec((1, N), lambda i: (0, 0)),
                pl.BlockSpec((1, N), lambda i: (0, 0)),
            ],
            out_specs=(pl.BlockSpec((tm_r, N), lambda i: (i, 0)),
                       pl.BlockSpec((tm_r, N), lambda i: (i, 0))),
            compiler_params=pltpu.CompilerParams(
                dimension_semantics=("parallel",),
                vmem_limit_bytes=VMEM_LIMIT),
            cost_estimate=cost,
        )(*args)

    # K-tiled fallback; tm kept small (v7x 64 MiB VMEM with full-width N blocks).
    # TODO(synk): add N tiling with a two-pass LN for d_model >= 2048 on v7x.
    tm_t = _pick_tile(M, 128, 16)
    tk = _pick_tile(K, 512, 128)
    return pl.pallas_call(
        functools.partial(_linear_add_ln_tiled_kernel, eps=eps, n=float(N)),
        out_shape=out_shape,
        grid=(M // tm_t, K // tk),
        in_specs=[
            pl.BlockSpec((tm_t, tk), lambda i, k: (i, k)),
            pl.BlockSpec((tk, N), lambda i, k: (k, 0)),
            pl.BlockSpec((1, N), lambda i, k: (0, 0)),
            pl.BlockSpec((tm_t, N), lambda i, k: (i, 0)),
            pl.BlockSpec((1, N), lambda i, k: (0, 0)),
            pl.BlockSpec((1, N), lambda i, k: (0, 0)),
        ],
        out_specs=(pl.BlockSpec((tm_t, N), lambda i, k: (i, 0)),
                   pl.BlockSpec((tm_t, N), lambda i, k: (i, 0))),
        compiler_params=pltpu.CompilerParams(
            dimension_semantics=("parallel", "arbitrary"),
            vmem_limit_bytes=VMEM_LIMIT),
        cost_estimate=cost,
    )(*args)


# ------------- input projection with fused positional encoding ---------------

def _in_proj_kernel(x_ref, w_ref, b_ref, pos_ref, o32_ref, o16_ref):
    y = jnp.dot(x_ref[...], w_ref[...], preferred_element_type=jnp.float32)
    y = y + b_ref[...] + pos_ref[...]
    o32_ref[...] = y
    o16_ref[...] = y.astype(jnp.bfloat16)


def input_projection(x, w, b, pos, batch, seq):
    """x: (B*S, input_size) bf16, pos: (S, d_model) f32 -> (h_f32, h_bf16)."""
    M, K = x.shape
    N = w.shape[1]
    tm = _pick_tile(seq, 512, 16)          # tm divides S, so pos rows line up
    bps = seq // tm                        # row blocks per sequence
    return pl.pallas_call(
        _in_proj_kernel,
        out_shape=(jax.ShapeDtypeStruct((M, N), jnp.float32),
                   jax.ShapeDtypeStruct((M, N), jnp.bfloat16)),
        grid=(M // tm,),
        in_specs=[
            pl.BlockSpec((tm, K), lambda i: (i, 0)),
            pl.BlockSpec((K, N), lambda i: (0, 0)),
            pl.BlockSpec((1, N), lambda i: (0, 0)),
            pl.BlockSpec((tm, N), lambda i: (i % bps, 0)),   # fused pos-enc add
        ],
        out_specs=(pl.BlockSpec((tm, N), lambda i: (i, 0)),
                   pl.BlockSpec((tm, N), lambda i: (i, 0))),
        compiler_params=pltpu.CompilerParams(
            dimension_semantics=("parallel",),
            vmem_limit_bytes=VMEM_LIMIT),
    )(x, w, b.reshape(1, N).astype(jnp.float32), pos)


# ------------------ multi-head self-attention (lane-dense) ------------------

def _mha_kernel(q_ref, kv_ref, o_ref, *, nhead, scale):
    d_model = o_ref.shape[-1]
    dh = d_model // nhead
    # TODO(synk): for very long S, switch to flash-style online softmax with a
    # KV grid axis + m/l/acc scratch instead of a (tq, S) score block per head.
    for h in range(nhead):
        q = q_ref[:, h * dh:(h + 1) * dh]                         # (tq, dh)
        k = kv_ref[:, d_model + h * dh:d_model + (h + 1) * dh]    # (S, dh)
        v = kv_ref[:, 2 * d_model + h * dh:2 * d_model + (h + 1) * dh]
        s = jax.lax.dot_general(q, k, (((1,), (1,)), ((), ())),
                                preferred_element_type=jnp.float32) * scale
        m = jnp.max(s, axis=-1, keepdims=True)
        p = jnp.exp(s - m)
        l = jnp.sum(p, axis=-1, keepdims=True)
        o = jnp.dot(p.astype(v.dtype), v, preferred_element_type=jnp.float32)
        # per-head store (no lane concat; releases registers early)
        o_ref[:, h * dh:(h + 1) * dh] = (o / l).astype(o_ref.dtype)


def attention(qkv, batch, seq, d_model, nhead, *, tq=512):
    """qkv: (B*S, 3*d_model) bf16 laid out [q | k | v] along features.

    grid = (batch, S//tq): query rows tiled (caps the per-step score block and
    keeps both v7x TensorCores busy at small batch); the full (S, 3D) block is
    fetched once per batch element for K/V.
    """
    M = batch * seq
    tq = _pick_tile(seq, tq, 16)
    qb = seq // tq
    scale = float(d_model // nhead) ** -0.5
    return pl.pallas_call(
        functools.partial(_mha_kernel, nhead=nhead, scale=scale),
        out_shape=jax.ShapeDtypeStruct((M, d_model), jnp.bfloat16),
        grid=(batch, qb),
        in_specs=[
            pl.BlockSpec((tq, 3 * d_model), lambda b, qi: (b * qb + qi, 0)),
            pl.BlockSpec((seq, 3 * d_model), lambda b, qi: (b, 0)),
        ],
        out_specs=pl.BlockSpec((tq, d_model), lambda b, qi: (b * qb + qi, 0)),
        compiler_params=pltpu.CompilerParams(
            dimension_semantics=("parallel", "parallel"),
            vmem_limit_bytes=VMEM_LIMIT),
    )(qkv, qkv)


# ------------------------------ model wrapper -------------------------------

def init_params(key, input_size, d_model, nhead, num_layers, output_size):
    def nxt():
        nonlocal key
        key, sub = jax.random.split(key)
        return sub

    def dense(fan_in, fan_out, dtype=jnp.bfloat16):
        w = (jax.random.normal(nxt(), (fan_in, fan_out), jnp.float32) * 0.02
             ).astype(dtype)
        b = jnp.zeros((fan_out,), jnp.float32)
        return w, b

    params = {}
    params["in_proj"] = dense(input_size, d_model)
    params["pos_enc"] = jax.random.normal(nxt(), (1000, d_model),
                                          jnp.float32) * 0.02
    layers = []
    for _ in range(num_layers):
        layers.append({
            "wqkv": dense(d_model, 3 * d_model),
            "wo": dense(d_model, d_model),
            "ln1": (jnp.ones((d_model,), jnp.float32),
                    jnp.zeros((d_model,), jnp.float32)),
            "ff1": dense(d_model, 4 * d_model),
            "ff2": dense(4 * d_model, d_model),
            "ln2": (jnp.ones((d_model,), jnp.float32),
                    jnp.zeros((d_model,), jnp.float32)),
        })
    params["layers"] = layers
    # tiny head kept in f32 / plain JAX (sub-128 lane output widths)
    params["head1"] = dense(d_model, d_model // 2, dtype=jnp.float32)
    params["head2"] = dense(d_model // 2, output_size, dtype=jnp.float32)
    return params


def transformer_forward(params, x, nhead):
    B, S, _ = x.shape
    d_model = params["in_proj"][0].shape[1]

    # input projection + fused positional encoding; residual stream kept in f32
    # with a fused bf16 copy for the next matmul (no JAX-side casts anywhere).
    w, b = params["in_proj"]
    pos = params["pos_enc"][:S, :]
    h32, h16 = input_projection(x.reshape(B * S, -1).astype(jnp.bfloat16),
                                w, b, pos, B, S)                   # (B*S, D)

    for layer in params["layers"]:
        # ---- multi-head self-attention (post-LN encoder layer) ----
        wqkv, bqkv = layer["wqkv"]
        qkv = linear(h16, wqkv, bqkv, out_dtype=jnp.bfloat16)      # (B*S, 3D)
        attn = attention(qkv, B, S, d_model, nhead)                # (B*S, D)
        wo, bo = layer["wo"]
        g1, be1 = layer["ln1"]
        h32, h16 = linear_add_ln(attn, wo, bo, h32, g1, be1)       # fused add+LN

        # ---- feed-forward ----
        # TODO(synk): fuse ff1+ff2 (keep the (tm, 4D) intermediate in VMEM) to
        # avoid the (B*S, 4D) HBM round trip; largest relative win on v5e.
        w1, b1 = layer["ff1"]
        w2, b2 = layer["ff2"]
        ff = linear(h16, w1, b1, relu=True, out_dtype=jnp.bfloat16)
        g2, be2 = layer["ln2"]
        h32, h16 = linear_add_ln(ff, w2, b2, h32, g2, be2)         # fused add+LN

    # mean pool over sequence + tiny MLP head in plain JAX (lane widths D//2
    # and 1 would only pay Pallas launch + masked-store overhead).
    pooled = jnp.mean(h32.reshape(B, S, d_model), axis=1)          # (B, D)
    w, b = params["head1"]
    out = jnp.maximum(pooled @ w + b, 0.0)
    w, b = params["head2"]
    out = out @ w + b
    return out                                                     # (B, out)


if __name__ == "__main__":
    input_size = 16
    d_model = 32
    nhead = 4
    num_layers = 2
    output_size = 1
    B, S = 2, 8

    key = jax.random.PRNGKey(0)
    pkey, xkey = jax.random.split(key)
    params = init_params(pkey, input_size, d_model, nhead, num_layers,
                         output_size)
    x = jax.random.normal(xkey, (B, S, input_size), jnp.float32)

    out = transformer_forward(params, x, nhead)
    out = jax.block_until_ready(out)
    assert out.shape == (B, output_size)
    print("KERNEL_OK")
</pallas_src>

<mosaic_0001>
module attributes {stable_mosaic.version = 11 : i64} {
  func.func @_in_proj_kernel(%arg0: i32, %arg1: memref<8x16xbf16, #tpu.memory_space<vmem>>, %arg2: memref<16x32xbf16, #tpu.memory_space<vmem>>, %arg3: memref<1x32xf32, #tpu.memory_space<vmem>>, %arg4: memref<8x32xf32, #tpu.memory_space<vmem>>, %arg5: memref<8x32xf32, #tpu.memory_space<vmem>>, %arg6: memref<8x32xbf16, #tpu.memory_space<vmem>>) attributes {dimension_semantics = [#tpu.dimension_semantics<parallel>], iteration_bounds = array<i64: 2>, scalar_prefetch = 0 : i64, scratch_operands = 0 : i64, tpu.core_type = #tpu.core_type<tc>, window_params = [{transform_indices = @transform_0, window_bounds = array<i64: 8, 16>}, {pipeline_mode = #tpu.pipeline_mode<synchronous>, transform_indices = @transform_1, window_bounds = array<i64: 16, 32>}, {pipeline_mode = #tpu.pipeline_mode<synchronous>, transform_indices = @transform_2, window_bounds = array<i64: 1, 32>}, {transform_indices = @transform_3, window_bounds = array<i64: 8, 32>}, {transform_indices = @transform_4, window_bounds = array<i64: 8, 32>}, {transform_indices = @transform_5, window_bounds = array<i64: 8, 32>}]} {
    %c0 = arith.constant 0 : index
    %c0_0 = arith.constant 0 : index
    %0 = vector.load %arg1[%c0, %c0_0] : memref<8x16xbf16, #tpu.memory_space<vmem>>, vector<8x16xbf16>
    %c0_1 = arith.constant 0 : index
    %c0_2 = arith.constant 0 : index
    %1 = vector.load %arg2[%c0_1, %c0_2] : memref<16x32xbf16, #tpu.memory_space<vmem>>, vector<16x32xbf16>
    %cst = arith.constant dense<0.000000e+00> : vector<8x32xf32>
    %2 = tpu.matmul %0, %1, %cst {dimension_numbers = #tpu.dot_dimension_numbers<[1], [0], [0], [1], [0, 0, 1, 1], [], []>} : vector<8x16xbf16>, vector<16x32xbf16>, vector<8x32xf32> -> vector<8x32xf32>
    %c0_3 = arith.constant 0 : index
    %c0_4 = arith.constant 0 : index
    %3 = vector.load %arg3[%c0_3, %c0_4] : memref<1x32xf32, #tpu.memory_space<vmem>>, vector<1x32xf32>
    %4 = vector.broadcast %3 : vector<1x32xf32> to vector<8x32xf32>
    %5 = arith.addf %2, %4 : vector<8x32xf32>
    %c0_5 = arith.constant 0 : index
    %c0_6 = arith.constant 0 : index
    %6 = vector.load %arg4[%c0_5, %c0_6] : memref<8x32xf32, #tpu.memory_space<vmem>>, vector<8x32xf32>
    %7 = arith.addf %5, %6 : vector<8x32xf32>
    %c0_7 = arith.constant 0 : index
    %c0_8 = arith.constant 0 : index
    %8 = vector.load %arg5[%c0_7, %c0_8] : memref<8x32xf32, #tpu.memory_space<vmem>>, vector<8x32xf32>
    tpu.vector_store %arg5[%c0_7, %c0_8], %7 {strides = array<i32>} : memref<8x32xf32, #tpu.memory_space<vmem>>, vector<8x32xf32>,
    %9 = arith.truncf %7 : vector<8x32xf32> to vector<8x32xbf16>
    %c0_9 = arith.constant 0 : index
    %c0_10 = arith.constant 0 : index
    %10 = vector.load %arg6[%c0_9, %c0_10] : memref<8x32xbf16, #tpu.memory_space<vmem>>, vector<8x32xbf16>
    tpu.vector_store %arg6[%c0_9, %c0_10], %9 {strides = array<i32>} : memref<8x32xbf16, #tpu.memory_space<vmem>>, vector<8x32xbf16>,
    return
  }
  func.func @transform_0(%arg0: i32) -> (i32, i32) {
    %c0_i32 = arith.constant 0 : i32
    %c0_i32_0 = arith.constant 0 : i32
    return %arg0, %c0_i32 : i32, i32
  }
  func.func @transform_1(%arg0: i32) -> (i32, i32) {
    %c0_i32 = arith.constant 0 : i32
    %c0_i32_0 = arith.constant 0 : i32
    %c0_i32_1 = arith.constant 0 : i32
    return %c0_i32, %c0_i32_0 : i32, i32
  }
  func.func @transform_2(%arg0: i32) -> (i32, i32) {
    %c0_i32 = arith.constant 0 : i32
    %c0_i32_0 = arith.constant 0 : i32
    %c0_i32_1 = arith.constant 0 : i32
    return %c0_i32, %c0_i32_0 : i32, i32
  }
  func.func @transform_3(%arg0: i32) -> (i32, i32) {
    %c1_i32 = arith.constant 1 : i32
    %c0_i32 = arith.constant 0 : i32
    %0 = arith.cmpi eq, %c1_i32, %c0_i32 : i32
    %c1_i32_0 = arith.constant 1 : i32
    %1 = arith.select %0, %c1_i32_0, %c1_i32 : i32
    %2 = arith.remsi %arg0, %1 : i32
    %c0_i32_1 = arith.constant 0 : i32
    %3 = arith.cmpi ne, %2, %c0_i32_1 : i32
    %c0_i32_2 = arith.constant 0 : i32
    %4 = arith.cmpi slt, %2, %c0_i32_2 : i32
    %c0_i32_3 = arith.constant 0 : i32
    %5 = arith.cmpi slt, %1, %c0_i32_3 : i32
    %6 = arith.xori %4, %5 : i1
    %7 = arith.andi %6, %3 : i1
    %8 = arith.addi %2, %1 : i32
    %9 = arith.select %7, %8, %2 : i32
    %c0_i32_4 = arith.constant 0 : i32
    %c0_i32_5 = arith.constant 0 : i32
    return %9, %c0_i32_4 : i32, i32
  }
  func.func @transform_4(%arg0: i32) -> (i32, i32) {
    %c0_i32 = arith.constant 0 : i32
    %c0_i32_0 = arith.constant 0 : i32
    return %arg0, %c0_i32 : i32, i32
  }
  func.func @transform_5(%arg0: i32) -> (i32, i32) {
    %c0_i32 = arith.constant 0 : i32
    %c0_i32_0 = arith.constant 0 : i32
    return %arg0, %c0_i32 : i32, i32
  }
}

</mosaic_0001>

<llo_original>
// kernel: tpu_custom_call.1
$region0: #{tpu_custom_call.1}
  #allocation0 [shape = 'u32[]', space=smem, size = 0x4, offset = 0x4, fixed_abs, tag = 'smem constant byte address 0x4 - core index']
  #allocation1 [shape = 'u32[144,128]{1,0:T(1,128)}', space=vmem, size = 0x12000, scoped, tag = 'internal scratch']
  %s0 = inlined_call_operand.hbm [shape: bf16[16,16], index: 0, kind: input, shape index: {}]
  %s1 = inlined_call_operand.hbm [shape: bf16[16,32], index: 1, kind: input, shape index: {}]
  %s2 = inlined_call_operand.vmem [shape: f32[1,32], index: 2, kind: input, shape index: {}]
  %s3 = inlined_call_operand.hbm [shape: f32[8,32], index: 3, kind: input, shape index: {}]
  %s4 = inlined_call_operand.hbm [shape: f32[16,32], index: 4, kind: output, shape index: {0}]
  %s5 = inlined_call_operand.hbm [shape: bf16[16,32], index: 5, kind: output, shape index: {1}]
  %6 = xla_tuple %s4, %s5
  %s7 = sld [smem:[#allocation0]]
  $region69: #{tpu_custom_call.1} parent=0
    _
  %s9 = ssub.s32 1, %s7
  %s10 = scalar_select 0, %s9, %s7
  $region1: #{tpu_custom_call.1} parent=0
    #allocation2 [shape = 'u8[4096]{0}', space=vmem, size = 0x1000, scoped, tag = 'input window, operand 0']
    #allocation3 [shape = 's32[2]{0}', space=sflag, size = 0x8, scoped, tag = 'scoped memory for tpu_custom_call.1']
    #allocation4 [shape = 's32[2]{0}', space=sflag, size = 0x8, scoped, tag = 'scoped memory for tpu_custom_call.1']
    #allocation5 [shape = 'u8[4096]{0}', space=vmem, size = 0x1000, scoped, tag = 'input window, operand 1, single buffered']
    #allocation6 [shape = 's32[1]{0}', space=sflag, size = 0x4, scoped, tag = 'scoped memory for tpu_custom_call.1']
    #allocation7 [shape = 'u8[4096]{0}', space=vmem, size = 0x1000, scoped, tag = 'input window, operand 3, single buffered']
    #allocation8 [shape = 'u8[8192]{0}', space=vmem, size = 0x2000, scoped, tag = 'output window, operand 0']
    #allocation9 [shape = 'u8[4096]{0}', space=vmem, size = 0x1000, scoped, tag = 'output window, operand 1']
    #allocation10 [shape = 's32[2]{0}', space=sflag, size = 0x8, scoped, tag = 'scoped memory for tpu_custom_call.1']
    %11 = vsyncpa [#allocation3], 0
    %s12 = scalar_lea.sflag [#allocation3], 1
    %13 = vsyncpa %s12, 0
    %14 = vsyncpa [#allocation6], 0
    %15 = vsyncpa [#allocation4], 0
    %s16 = scalar_lea.sflag [#allocation4], 1
    %17 = vsyncpa %s16, 0
    %18 = vsyncpa [#allocation10], 0
    %s19 = scalar_lea.sflag [#allocation10], 1
    %20 = vsyncpa %s19, 0
    loop: start=0, step=1, limit=4
    $region2: #{tpu_custom_call.1} parent=1 // loop_pre_header
      _
    $region3: #{tpu_custom_call.1} parent=1 // loop_header
      %s22 = sphi 0, %s26
      %p23 = scmp.ge.s32.totalorder %s22, 4
      %s32 = sphi 0, %s34
      %s35 = sphi 0, %s32
      %s36 = sphi 0, %s35
      %s52 = sphi 0, %s36
      %s56 = sphi 0, %s56
      %s58 = sphi 0, %s56
      %s59 = sphi 0, %s58
      %s73 = sphi 0, %s59
      %s77 = sphi 0, %s77
      %s79 = sphi 0, %s77
      %s80 = sphi 0, %s79
      %s94 = sphi 0, %s80
      %s98 = sphi 0, %s98
      %s100 = sphi 0, %s98
      %s101 = sphi 0, %s100
      %s115 = sphi 0, %s101
      %s121 = sphi 0, %s123
      %s124 = sphi 0, %s121
      %s125 = sphi 0, %s124
      %s141 = sphi 0, %s125
      %s147 = sphi 0, %s149
      %s150 = sphi 0, %s147
      %s151 = sphi 0, %s150
      %s167 = sphi 0, %s151
    $region4: #{tpu_custom_call.1} parent=1 // loop_header_branch
      %25 = sbr.rel (%p23) target = $region8
    $region5: #{tpu_custom_call.1} parent=1 // loop_body
      %s27 = ssub.s32 %s22, 1
      %s28 = ssub.s32 %s22, 2
      %s29 = sadd.s32 %s22, 1
      %s30 = ssub.s32 %s22, %s29
      %p31 = scmp.eq.s32.totalorder %s30, 0
      %s33 = sadd.s32 %s32, 1
      %s34 = scalar_select %p31, %s32, %s33
      %p37 = pneg %p31
      %p38 = scmp.eq.s32.totalorder %s22, 1
      %p39 = por %p37, %p38
      %p40 = scmp.ne.s32.totalorder %s32, %s35
      %p41 = scmp.eq.s32.totalorder %s22, 0
      %p42 = por %p40, %p41
      %p43 = scmp.ne.s32.totalorder %s32, %s35
      %p44 = scmp.eq.s32.totalorder %s27, 1
      %p45 = por %p43, %p44
      %p46 = scmp.ne.s32.totalorder %s35, %s36
      %p47 = scmp.eq.s32.totalorder %s27, 0
      %p48 = por %p46, %p47
      %p49 = scmp.ne.s32.totalorder %s35, %s36
      %p50 = scmp.eq.s32.totalorder %s28, 1
      %p51 = por %p49, %p50
      %p53 = scmp.ne.s32.totalorder %s36, %s52
      %p54 = scmp.eq.s32.totalorder %s28, 0
      %p55 = por %p53, %p54
      %s57 = sadd.s32 %s56, 1
      %p60 = scmp.eq.s32.totalorder %s22, 1
      %p61 = scmp.ne.s32.totalorder %s56, %s58
      %p62 = scmp.eq.s32.totalorder %s22, 0
      %p63 = por %p61, %p62
      %p64 = scmp.ne.s32.totalorder %s56, %s58
      %p65 = scmp.eq.s32.totalorder %s27, 1
      %p66 = por %p64, %p65
      %p67 = scmp.ne.s32.totalorder %s58, %s59
      %p68 = scmp.eq.s32.totalorder %s27, 0
      %p69 = por %p67, %p68
      %p70 = scmp.ne.s32.totalorder %s58, %s59
      %p71 = scmp.eq.s32.totalorder %s28, 1
      %p72 = por %p70, %p71
      %p74 = scmp.ne.s32.totalorder %s59, %s73
      %p75 = scmp.eq.s32.totalorder %s28, 0
      %p76 = por %p74, %p75
      %s78 = sadd.s32 %s77, 1
      %p81 = scmp.eq.s32.totalorder %s22, 1
      %p82 = scmp.ne.s32.totalorder %s77, %s79
      %p83 = scmp.eq.s32.totalorder %s22, 0
      %p84 = por %p82, %p83
      %p85 = scmp.ne.s32.totalorder %s77, %s79
      %p86 = scmp.eq.s32.totalorder %s27, 1
      %p87 = por %p85, %p86
      %p88 = scmp.ne.s32.totalorder %s79, %s80
      %p89 = scmp.eq.s32.totalorder %s27, 0
      %p90 = por %p88, %p89
      %p91 = scmp.ne.s32.totalorder %s79, %s80
      %p92 = scmp.eq.s32.totalorder %s28, 1
      %p93 = por %p91, %p92
      %p95 = scmp.ne.s32.totalorder %s80, %s94
      %p96 = scmp.eq.s32.totalorder %s28, 0
      %p97 = por %p95, %p96
      %s99 = sadd.s32 %s98, 1
      %p102 = scmp.eq.s32.totalorder %s22, 1
      %p103 = scmp.ne.s32.totalorder %s98, %s100
      %p104 = scmp.eq.s32.totalorder %s22, 0
      %p105 = por %p103, %p104
      %p106 = scmp.ne.s32.totalorder %s98, %s100
      %p107 = scmp.eq.s32.totalorder %s27, 1
      %p108 = por %p106, %p107
      %p109 = scmp.ne.s32.totalorder %s100, %s101
      %p110 = scmp.eq.s32.totalorder %s27, 0
      %p111 = por %p109, %p110
      %p112 = scmp.ne.s32.totalorder %s100, %s101
      %p113 = scmp.eq.s32.totalorder %s28, 1
      %p114 = por %p112, %p113
      %p116 = scmp.ne.s32.totalorder %s101, %s115
      %p117 = scmp.eq.s32.totalorder %s28, 0
      %p118 = por %p116, %p117
      %s119 = ssub.s32 %s22, %s29
      %p120 = scmp.eq.s32.totalorder %s119, 0
      %s122 = sadd.s32 %s121, 1
      %s123 = scalar_select %p120, %s121, %s122
      %p126 = pneg %p120
      %p127 = scmp.eq.s32.totalorder %s22, 1
      %p128 = por %p126, %p127
      %p129 = scmp.ne.s32.totalorder %s121, %s124
      %p130 = scmp.eq.s32.totalorder %s22, 0
      %p131 = por %p129, %p130
      %p132 = scmp.ne.s32.totalorder %s121, %s124
      %p133 = scmp.eq.s32.totalorder %s27, 1
      %p134 = por %p132, %p133
      %p135 = scmp.ne.s32.totalorder %s124, %s125
      %p136 = scmp.eq.s32.totalorder %s27, 0
      %p137 = por %p135, %p136
      %p138 = scmp.ne.s32.totalorder %s124, %s125
      %p139 = scmp.eq.s32.totalorder %s28, 1
      %p140 = por %p138, %p139
      %p142 = scmp.ne.s32.totalorder %s125, %s141
      %p143 = scmp.eq.s32.totalorder %s28, 0
      %p144 = por %p142, %p143
      %s145 = ssub.s32 %s22, %s29
      %p146 = scmp.eq.s32.totalorder %s145, 0
      %s148 = sadd.s32 %s147, 1
      %s149 = scalar_select %p146, %s147, %s148
      %p152 = pneg %p146
      %p153 = scmp.eq.s32.totalorder %s22, 1
      %p154 = por %p152, %p153
      %p155 = scmp.ne.s32.totalorder %s147, %s150
      %p156 = scmp.eq.s32.totalorder %s22, 0
      %p157 = por %p155, %p156
      %p158 = scmp.ne.s32.totalorder %s147, %s150
      %p159 = scmp.eq.s32.totalorder %s27, 1
      %p160 = por %p158, %p159
      %p161 = scmp.ne.s32.totalorder %s150, %s151
      %p162 = scmp.eq.s32.totalorder %s27, 0
      %p163 = por %p161, %p162
      %p164 = scmp.ne.s32.totalorder %s150, %s151
      %p165 = scmp.eq.s32.totalorder %s28, 1
      %p166 = por %p164, %p165
      %p168 = scmp.ne.s32.totalorder %s151, %s167
      %p169 = scmp.eq.s32.totalorder %s28, 0
      %p170 = por %p168, %p169
      %p171 = scmp.le.s32.totalorder 1, %s22
      %p172 = scmp.lt.s32.totalorder %s22, 3
      %p173 = pnand %p171, %p172
      %p174 = pneg %p173
      // Predicated region
      $region9: #{tpu_custom_call.1} parent=5 // pred_check
        _
      $region10: #{tpu_custom_call.1} parent=5 // pred_check_branch
        %176 = sbr.rel (%p173) target = $region12
      $region11: #{tpu_custom_call.1} parent=5 // pred_region
        %s177 = ssub.s32 %s22, 1
        // Predicated region
        $region13: #{tpu_custom_call.1} parent=11 // pred_check
          %p178 = pneg %p69
        $region14: #{tpu_custom_call.1} parent=11 // pred_check_branch
          %180 = sbr.rel (%p178) target = $region16
        $region15: #{tpu_custom_call.1} parent=11 // pred_region
          %s182 = ssub.s32 128, 128
          %183 = vsyncadd [#allocation6], %s182
          %s184 = sshll.u32 [#allocation5], 4
          %s185 = int_to_ptr.vmem [resolvable:$true] %s184
          %190 = dma.hbm_to_vmem [thread:$0]  %s1, 128, %s185, [#allocation6], 64, 64, 4
        $region16: #{tpu_custom_call.1} parent=11 // pred_fallthru
          _
        // Predicated region
        $region17: #{tpu_custom_call.1} parent=11 // pred_check
          %p191 = pneg %p90
        $region18: #{tpu_custom_call.1} parent=11 // pred_check_branch
          %193 = sbr.rel (%p191) target = $region20
        $region19: #{tpu_custom_call.1} parent=11 // pred_region
          _
        $region20: #{tpu_custom_call.1} parent=11 // pred_fallthru
          _
        // Predicated region
        $region21: #{tpu_custom_call.1} parent=11 // pred_check
          %p194 = pneg %p111
        $region22: #{tpu_custom_call.1} parent=11 // pred_check_branch
          %196 = sbr.rel (%p194) target = $region24
        $region23: #{tpu_custom_call.1} parent=11 // pred_region
          %s198 = ssub.s32 128, 128
          %199 = vsyncadd [#allocation6], %s198
          %s201 = sshll.u32 [#allocation7], 4
          %s202 = int_to_ptr.vmem [resolvable:$true] %s201
          %204 = dma.hbm_to_vmem [thread:$0]  %s3, 128, %s202, [#allocation6]
        $region24: #{tpu_custom_call.1} parent=11 // pred_fallthru
          _
      $region12: #{tpu_custom_call.1} parent=5 // pred_fallthru
        _
      %p205 = scmp.lt.s32.totalorder %s22, 2
      // Predicated region
      $region25: #{tpu_custom_call.1} parent=5 // pred_check
        %p206 = pneg %p205
      $region26: #{tpu_custom_call.1} parent=5 // pred_check_branch
        %208 = sbr.rel (%p206) target = $region28
      $region27: #{tpu_custom_call.1} parent=5 // pred_region
        // Predicated region
        $region29: #{tpu_custom_call.1} parent=27 // pred_check
          %p209 = pneg %p42
        $region30: #{tpu_custom_call.1} parent=27 // pred_check_branch
          %211 = sbr.rel (%p209) target = $region32
        $region31: #{tpu_custom_call.1} parent=27 // pred_region
          %s212 = sand.u32 %s32, 1
          %s213 = scalar_lea.sflag [#allocation3], %s212
          %s214 = sand.u32 %s32, 1
          %s215 = smul.addr %s214, 4
          %s216 = scalar_lea.vmem [#allocation2], %s215
          %s218 = ssub.s32 64, 64
          %219 = vsyncadd %s213, %s218
          %s220 = smul.addr %s22, 64
          %s221 = scalar_lea.hbm %s0, %s220
          %s223 = sshll.u32 %s216, 4
          %s224 = int_to_ptr.vmem [resolvable:$true] %s223
          %226 = dma.hbm_to_vmem [thread:$0]  %s221, 64, %s224, %s213
        $region32: #{tpu_custom_call.1} parent=27 // pred_fallthru
          _
      $region28: #{tpu_custom_call.1} parent=5 // pred_fallthru
        _
      %p227 = scmp.le.s32.totalorder 1, %s22
      %p228 = scmp.lt.s32.totalorder %s22, 3
      %p229 = pnand %p227, %p228
      %p230 = pneg %p229
      // Predicated region
      $region33: #{tpu_custom_call.1} parent=5 // pred_check
        _
      $region34: #{tpu_custom_call.1} parent=5 // pred_check_branch
        %232 = sbr.rel (%p229) target = $region36
      $region35: #{tpu_custom_call.1} parent=5 // pred_region
        %s233 = ssub.s32 %s22, 1
        %s234 = sand.u32 %s35, 1
        %s235 = scalar_lea.sflag [#allocation3], %s234
        %s236 = sand.u32 %s35, 1
        %s237 = smul.addr %s236, 4
        %s238 = scalar_lea.vmem [#allocation2], %s237
        // Predicated region
        $region37: #{tpu_custom_call.1} parent=35 // pred_check
          %p239 = pneg %p48
        $region38: #{tpu_custom_call.1} parent=35 // pred_check_branch
          %241 = sbr.rel (%p239) target = $region40
        $region39: #{tpu_custom_call.1} parent=35 // pred_region
          %242 = dma.done %s235, 64
        $region40: #{tpu_custom_call.1} parent=35 // pred_fallthru
          _
        // Predicated region
        $region41: #{tpu_custom_call.1} parent=35 // pred_check
          %p243 = pneg %p69
        $region42: #{tpu_custom_call.1} parent=35 // pred_check_branch
          %245 = sbr.rel (%p243) target = $region44
        $region43: #{tpu_custom_call.1} parent=35 // pred_region
          %246 = dma.done [#allocation6], 128
        $region44: #{tpu_custom_call.1} parent=35 // pred_fallthru
          _
        // Predicated region
        $region45: #{tpu_custom_call.1} parent=35 // pred_check
          %p247 = pneg %p111
        $region46: #{tpu_custom_call.1} parent=35 // pred_check_branch
          %249 = sbr.rel (%p247) target = $region48
        $region47: #{tpu_custom_call.1} parent=35 // pred_region
          %250 = dma.done [#allocation6], 128
        $region48: #{tpu_custom_call.1} parent=35 // pred_fallthru
          _
        %s251 = sand.u32 %s35, 1
        %s252 = scalar_lea.sflag [#allocation3], %s251
        %s253 = sand.u32 %s35, 1
        %s254 = smul.addr %s253, 4
        %s255 = scalar_lea.vmem [#allocation2], %s254
        %p256 = pneg %p48
        %p257 = pneg %p45
        %p258 = pneg %p69
        %p259 = pneg %p66
        %p260 = pneg %p90
        %p261 = pneg %p87
        %p262 = pneg %p111
        %p263 = pneg %p108
        %p264 = pneg %p137
        %p265 = pneg %p134
        %s266 = sand.u32 %s124, 1
        %s267 = scalar_lea.sflag [#allocation4], %s266
        %s268 = sand.u32 %s124, 1
        %s269 = smul.addr %s268, 8
        %s270 = scalar_lea.vmem [#allocation8], %s269
        %p271 = pneg %p163
        %p272 = pneg %p160
        %s273 = sand.u32 %s150, 1
        %s274 = scalar_lea.sflag [#allocation10], %s273
        %s275 = sand.u32 %s150, 1
        %s276 = smul.addr %s275, 4
        %s277 = scalar_lea.vmem [#allocation9], %s276
        %v279 = vld [vmem:[%s238] sm:$0xf]
        %v280 = vld [vmem:[#allocation5] sm:$0xf]
        %v281 = vld [vmem:[#allocation5 + $0x4] sm:$0xf]
        %v282 = vld [vmem:[%s2] sm:$0x1]
        %v284 = vlaneseq
        %v285 = vshrl.u32 %v284, 7
        %v286 = vsub.s32 0, %v285
        %v287 = vrot.slane %v282, %v286
        %v291 = vunpack.c.l.b16 %v280
        %v292 = vunpack.c.l.b16 %v281
        %v293 = vpack.c.b16 %v292, %v291
        %vm295 = vcmask 130048
        %v297 = vsel %vm295, %v279, 0
        %299 = vmatprep.subr.bf16.mxu0 0
        %300 = vmatpush1.bf16.msra.mxu0 0
        %301 = vmatprep.subr.bf16.mxu0 0
        %302 = vmatpush1.bf16.msra.mxu0 0
        %303 = vmatprep.subr.bf16.mxu0 0
        %304 = vmatpush1.bf16.msra.mxu0 0
        %305 = vmatprep.subr.bf16.mxu0 0
        %306 = vmatpush1.bf16.msra.mxu0 0
        %307 = vmatprep.subr.bf16.mxu0 0
        %308 = vmatpush1.bf16.msra.mxu0 0
        %309 = vmatprep.subr.bf16.mxu0 0
        %310 = vmatpush1.bf16.msra.mxu0 0
        %311 = vmatprep.subr.bf16.mxu0 0
        %312 = vmatpush1.bf16.msra.mxu0 0
        %313 = vmatprep.subr.bf16.mxu0 0
        %314 = vmatpush1.bf16.msra.mxu0 %v293
        %315 = vmatprep.subr.bf16.mxu0 0
        %316 = vmatpush2.bf16.msra.mxu0 0
        %317 = vmatprep.subr.bf16.mxu0 0
        %318 = vmatpush2.bf16.msra.mxu0 0
        %319 = vmatprep.subr.bf16.mxu0 0
        %320 = vmatpush2.bf16.msra.mxu0 0
        %321 = vmatprep.subr.bf16.mxu0 0
        %322 = vmatpush2.bf16.msra.mxu0 0
        %323 = vmatprep.subr.bf16.mxu0 0
        %324 = vmatpush2.bf16.msra.mxu0 0
        %325 = vmatprep.subr.bf16.mxu0 0
        %326 = vmatpush2.bf16.msra.mxu0 0
        %327 = vmatprep.subr.bf16.mxu0 0
        %328 = vmatpush2.bf16.msra.mxu0 0
        %329 = vmatprep.subr.bf16.mxu0 0
        %330 = vmatpush2.bf16.msra.mxu0 0
        %331 = vmatprep.mubr.bf16.mxu0 0
        %332 = vmatmul.mubr.bf16.gmra.mxu0 %v297
        %v333 = vpop.f32.mrf.mxu0
        %v334 = vadd.f32 %v287, %v333
        %v335 = vpop.f32.mrf.mxu0
        %v336 = vpop.f32.mrf.mxu0
        %v337 = vpop.f32.mrf.mxu0
        %338 = vdwg.mxu0
        %v339 = vld [vmem:[#allocation7] sm:$0xff]
        %v340 = vadd.f32 %v334, %v339
        %vm341 = vcmask 261120
        %342 = vst.msk [vmem:[%s270] sm:$0xff] %vm341, %v340
        %v343 = vpack.c.bf16 %v340, %v340
        %vm344 = vcmask 257024
        %345 = vst.msk [vmem:[%s277] sm:$0xf] %vm344, %v343
        %s346 = sand.u32 %s124, 1
        %s347 = scalar_lea.sflag [#allocation4], %s346
        %s348 = sand.u32 %s124, 1
        %s349 = smul.addr %s348, 8
        %s350 = scalar_lea.vmem [#allocation8], %s349
        %s351 = sand.u32 %s150, 1
        %s352 = scalar_lea.sflag [#allocation10], %s351
        %s353 = sand.u32 %s150, 1
        %s354 = smul.addr %s353, 4
        %s355 = scalar_lea.vmem [#allocation9], %s354
        // Predicated region
        $region49: #{tpu_custom_call.1} parent=35 // pred_check
          %p356 = pneg %p134
        $region50: #{tpu_custom_call.1} parent=35 // pred_check_branch
          %358 = sbr.rel (%p356) target = $region52
        $region51: #{tpu_custom_call.1} parent=35 // pred_region
          %s360 = ssub.s32 128, 128
          %361 = vsyncadd %s347, %s360
          %s362 = smul.addr %s27, 128
          %s363 = scalar_lea.hbm %s4, %s362
          %s365 = sshll.u32 %s350, 4
          %s366 = int_to_ptr.vmem [resolvable:$true] %s365
          %368 = dma.vmem_to_hbm [thread:$0]  %s366, 128, %s363, %s347
        $region52: #{tpu_custom_call.1} parent=35 // pred_fallthru
          _
        // Predicated region
        $region53: #{tpu_custom_call.1} parent=35 // pred_check
          %p369 = pneg %p160
        $region54: #{tpu_custom_call.1} parent=35 // pred_check_branch
          %371 = sbr.rel (%p369) target = $region56
        $region55: #{tpu_custom_call.1} parent=35 // pred_region
          %s373 = ssub.s32 64, 64
          %374 = vsyncadd %s352, %s373
          %s375 = smul.addr %s27, 64
          %s376 = scalar_lea.hbm %s5, %s375
          %s378 = sshll.u32 %s355, 4
          %s379 = int_to_ptr.vmem [resolvable:$true] %s378
          %381 = dma.vmem_to_hbm [thread:$0]  %s379, 64, %s376, %s352
        $region56: #{tpu_custom_call.1} parent=35 // pred_fallthru
          _
      $region36: #{tpu_custom_call.1} parent=5 // pred_fallthru
        _
      %p382 = scmp.le.s32.totalorder 2, %s22
      // Predicated region
      $region57: #{tpu_custom_call.1} parent=5 // pred_check
        %p383 = pneg %p382
      $region58: #{tpu_custom_call.1} parent=5 // pred_check_branch
        %385 = sbr.rel (%p383) target = $region60
      $region59: #{tpu_custom_call.1} parent=5 // pred_region
        %s386 = ssub.s32 %s22, 2
        // Predicated region
        $region61: #{tpu_custom_call.1} parent=59 // pred_check
          %p387 = pneg %p140
        $region62: #{tpu_custom_call.1} parent=59 // pred_check_branch
          %389 = sbr.rel (%p387) target = $region64
        $region63: #{tpu_custom_call.1} parent=59 // pred_region
          %s390 = sand.u32 %s125, 1
          %s391 = scalar_lea.sflag [#allocation4], %s390
          %s392 = sand.u32 %s125, 1
          %s393 = smul.addr %s392, 8
          %s394 = scalar_lea.vmem [#allocation8], %s393
          %395 = dma.done %s391, 128
        $region64: #{tpu_custom_call.1} parent=59 // pred_fallthru
          _
        // Predicated region
        $region65: #{tpu_custom_call.1} parent=59 // pred_check
          %p396 = pneg %p166
        $region66: #{tpu_custom_call.1} parent=59 // pred_check_branch
          %398 = sbr.rel (%p396) target = $region68
        $region67: #{tpu_custom_call.1} parent=59 // pred_region
          %s399 = sand.u32 %s151, 1
          %s400 = scalar_lea.sflag [#allocation10], %s399
          %s401 = sand.u32 %s151, 1
          %s402 = smul.addr %s401, 4
          %s403 = scalar_lea.vmem [#allocation9], %s402
          %404 = dma.done %s400, 64
        $region68: #{tpu_custom_call.1} parent=59 // pred_fallthru
          _
      $region60: #{tpu_custom_call.1} parent=5 // pred_fallthru
        _
    $region6: #{tpu_custom_call.1} parent=1 // loop_footer
      %s26 = sadd.s32 1, %s22
    $region7: #{tpu_custom_call.1} parent=1 // loop_footer_branch
      %21 = sbr.rel target = $region3
    $region8: #{tpu_custom_call.1} parent=1 // loop_exit
      _
    %405 = vsyncpa [#allocation3], 1
    %s406 = scalar_lea.sflag [#allocation3], 1
    %407 = vsyncpa %s406, 1
    %408 = vsyncpa [#allocation6], 1
    %409 = vsyncpa [#allocation4], 1
    %s410 = scalar_lea.sflag [#allocation4], 1
    %411 = vsyncpa %s410, 1
    %412 = vsyncpa [#allocation10], 1
    %s413 = scalar_lea.sflag [#allocation10], 1
    %414 = vsyncpa %s413, 1

</llo_original>
